<compile_context>
chip_gen: v5e
topology: v5e:2x2
jax: 0.10.0
libtpu: 0.0.40
codegen_flags: <defaults>
</compile_context>

<pallas_src>
import jax
import jax.numpy as jnp
from jax.experimental import pallas as pl
from jax.experimental.pallas import tpu as pltpu


def _round_up(x: int, m: int) -> int:
    return ((x + m - 1) // m) * m


def _firework_onehot_kernel(fw_ref, out_ref):
    """Feature-major flattened one-hot.

    fw_ref:  (C, Bt)  int32 pile heights (batch on the lane axis).
    out_ref: (C*R, Bt) out dtype; out[c*R + r, b] = (fw[c, b] == r).
    """
    C, Bt = fw_ref.shape
    CR = out_ref.shape[0]
    R = CR // C

    fw = fw_ref[...]                                              # (C, Bt) int32

    # Hot flattened feature row per color, computed once on the narrow array.
    # Completed piles (fw == R) get a -1 sentinel that matches no row -> the
    # whole R-wide block stays zero (== the dropped last one-hot column).
    col_off = jax.lax.broadcasted_iota(jnp.int32, (C, Bt), 0) * R
    hot = jnp.where(fw < R, fw + col_off, -1)                     # (C, Bt)

    row = jax.lax.broadcasted_iota(jnp.int32, (CR, Bt), 0)        # feature row idx

    # C is a tiny static constant -> fully unrolled pure-VPU compare + OR chain,
    # single cast at the store (no per-color f32 adds/converts).
    hit = row == hot[0:1, :]                                      # (CR, Bt) bool
    for c in range(1, C):
        hit = hit | (row == hot[c:c + 1, :])
    out_ref[...] = hit.astype(jnp.float32).astype(out_ref.dtype)


def firework_encoder(firework: jnp.ndarray, num_colors: int, num_ranks: int) -> jnp.ndarray:
    """Single-board forward, matching FireworkEncoder.forward.

    Args:
      firework: int array of shape [num_colors], values in [0, num_ranks].
    Returns:
      float32 array of shape [num_colors * num_ranks].
    """
    CR = num_colors * num_ranks
    fw = jnp.asarray(firework, jnp.int32).reshape(num_colors, 1)
    # Grid-less call, full arrays resident in VMEM; full-array blocks are exempt
    # from the (8,128) divisibility rule so no padding ops are needed.
    # TODO(synk): a standalone single-board call is pure dispatch overhead;
    # fuse into the consumer (or just use jax.nn.one_hot) for real workloads.
    out = pl.pallas_call(
        _firework_onehot_kernel,
        out_shape=jax.ShapeDtypeStruct((CR, 1), jnp.float32),
    )(fw)
    return out[:, 0]


def firework_encoder_batched(firework_batch: jnp.ndarray, num_ranks: int,
                             *, block_b: int = 8192,
                             out_dtype=jnp.float32) -> jnp.ndarray:
    """Batched forward: [B, num_colors] int -> (num_colors * num_ranks, B).

    Output is FEATURE-MAJOR (batch on the lane axis) so every vector op and
    store in the kernel is lane-dense.  out[c*R + r, b] == 1 iff board b's pile
    of color c has height r; per-board result is the column out[:, b], which
    equals FireworkEncoder.forward(board b).
    """
    fw = jnp.asarray(firework_batch, jnp.int32)
    B, C = fw.shape
    CR = C * num_ranks

    # Batch is the lane axis -> block width must be a multiple of 128.
    block_b = max(128, (block_b // 128) * 128)
    B128 = _round_up(B, 128)
    if block_b >= B128:
        # Whole batch would be a single grid step; split into two blocks when
        # the batch allows it so the "parallel" axis can shard across both v7x
        # TensorCores (and the pipeline has more than one step).
        block_b = 128 if B128 <= 128 else _round_up(B128 // 2, 128)
    B_pad = _round_up(B, block_b)

    fw_t = fw.T                                   # (C, B): tiny int relayout
    if B_pad != B:
        fw_t = jnp.pad(fw_t, ((0, 0), (0, B_pad - B)))

    out = pl.pallas_call(
        _firework_onehot_kernel,
        out_shape=jax.ShapeDtypeStruct((CR, B_pad), out_dtype),
        grid=(B_pad // block_b,),
        in_specs=[pl.BlockSpec((C, block_b), lambda i: (0, i))],
        out_specs=pl.BlockSpec((CR, block_b), lambda i: (0, i)),
        compiler_params=pltpu.CompilerParams(
            dimension_semantics=("parallel",)),
    )(fw_t)
    return out[:, :B]


def _reference_single(firework, num_ranks):
    oh = jax.nn.one_hot(firework, num_ranks + 1, dtype=jnp.float32)
    return oh[:, :-1].reshape(-1)


if __name__ == "__main__":
    num_colors = 5
    num_ranks = 5

    # Single board (matches the PyTorch module's forward exactly).
    key = jax.random.PRNGKey(0)
    fw_single = jax.random.randint(key, (num_colors,), 0, num_ranks + 1,
                                   dtype=jnp.int32)
    out_single = jax.block_until_ready(
        firework_encoder(fw_single, num_colors, num_ranks))
    ref_single = _reference_single(fw_single, num_ranks)
    assert out_single.shape == (num_colors * num_ranks,), out_single.shape
    assert out_single.dtype == jnp.float32, out_single.dtype
    assert jnp.array_equal(out_single, ref_single), (out_single, ref_single)

    # Batched, feature-major output (C*R, B): exercises padding (192 -> 256)
    # and a 2-step "parallel" grid with 128-lane blocks.
    B = 192
    fw_batch = jax.random.randint(
        jax.random.PRNGKey(0), (B, num_colors), 0, num_ranks + 1, dtype=jnp.int32)
    out_batch = jax.block_until_ready(
        firework_encoder_batched(fw_batch, num_ranks))
    ref_batch = jax.vmap(lambda f: _reference_single(f, num_ranks))(fw_batch)
    assert out_batch.shape == (num_colors * num_ranks, B), out_batch.shape
    assert out_batch.dtype == jnp.float32, out_batch.dtype
    assert jnp.array_equal(out_batch.T, ref_batch)

    # Optional bf16 output (exact for 0/1 values) for bf16 MXU consumers.
    out_bf16 = jax.block_until_ready(
        firework_encoder_batched(fw_batch, num_ranks, out_dtype=jnp.bfloat16))
    assert out_bf16.dtype == jnp.bfloat16, out_bf16.dtype
    assert jnp.array_equal(out_bf16.astype(jnp.float32).T, ref_batch)

    print("KERNEL_OK")
</pallas_src>

<mosaic_0001>
module attributes {stable_mosaic.version = 11 : i64} {
  func.func @_firework_onehot_kernel(%arg0: memref<5x1xi32, #tpu.memory_space<vmem>>, %arg1: memref<25x1xf32, #tpu.memory_space<vmem>>) attributes {dimension_semantics = [], scalar_prefetch = 0 : i64, scratch_operands = 0 : i64, tpu.core_type = #tpu.core_type<tc>} {
    %c0 = arith.constant 0 : index
    %c0_0 = arith.constant 0 : index
    %0 = vector.load %arg0[%c0, %c0_0] : memref<5x1xi32, #tpu.memory_space<vmem>>, vector<5x1xi32>
    %1 = tpu.iota {dimensions = array<i32: 0>} : vector<5x1xi32>
    %c5_i32 = arith.constant 5 : i32
    %2 = vector.broadcast %c5_i32 : i32 to vector<5x1xi32>
    %3 = arith.muli %1, %2 : vector<5x1xi32>
    %c5_i32_1 = arith.constant 5 : i32
    %4 = vector.broadcast %c5_i32_1 : i32 to vector<5x1xi32>
    %5 = arith.cmpi slt, %0, %4 : vector<5x1xi32>
    %6 = arith.addi %0, %3 : vector<5x1xi32>
    %c-1_i32 = arith.constant -1 : i32
    %7 = vector.broadcast %c-1_i32 : i32 to vector<5x1xi32>
    %8 = arith.select %5, %6, %7 : vector<5x1xi1>, vector<5x1xi32>
    %9 = tpu.iota {dimensions = array<i32: 0>} : vector<25x1xi32>
    %10 = vector.extract_strided_slice %8 {offsets = [0, 0], sizes = [1, 1], strides = [1, 1]} : vector<5x1xi32> to vector<1x1xi32>
    %11 = vector.broadcast %10 : vector<1x1xi32> to vector<25x1xi32>
    %12 = arith.cmpi eq, %9, %11 : vector<25x1xi32>
    %13 = vector.extract_strided_slice %8 {offsets = [1, 0], sizes = [1, 1], strides = [1, 1]} : vector<5x1xi32> to vector<1x1xi32>
    %14 = vector.broadcast %13 : vector<1x1xi32> to vector<25x1xi32>
    %15 = arith.cmpi eq, %9, %14 : vector<25x1xi32>
    %16 = arith.ori %12, %15 : vector<25x1xi1>
    %17 = vector.extract_strided_slice %8 {offsets = [2, 0], sizes = [1, 1], strides = [1, 1]} : vector<5x1xi32> to vector<1x1xi32>
    %18 = vector.broadcast %17 : vector<1x1xi32> to vector<25x1xi32>
    %19 = arith.cmpi eq, %9, %18 : vector<25x1xi32>
    %20 = arith.ori %16, %19 : vector<25x1xi1>
    %21 = vector.extract_strided_slice %8 {offsets = [3, 0], sizes = [1, 1], strides = [1, 1]} : vector<5x1xi32> to vector<1x1xi32>
    %22 = vector.broadcast %21 : vector<1x1xi32> to vector<25x1xi32>
    %23 = arith.cmpi eq, %9, %22 : vector<25x1xi32>
    %24 = arith.ori %20, %23 : vector<25x1xi1>
    %25 = vector.extract_strided_slice %8 {offsets = [4, 0], sizes = [1, 1], strides = [1, 1]} : vector<5x1xi32> to vector<1x1xi32>
    %26 = vector.broadcast %25 : vector<1x1xi32> to vector<25x1xi32>
    %27 = arith.cmpi eq, %9, %26 : vector<25x1xi32>
    %28 = arith.ori %24, %27 : vector<25x1xi1>
    %29 = arith.extui %28 : vector<25x1xi1> to vector<25x1xi32>
    %30 = arith.sitofp %29 : vector<25x1xi32> to vector<25x1xf32>
    %c0_2 = arith.constant 0 : index
    %c0_3 = arith.constant 0 : index
    %31 = vector.load %arg1[%c0_2, %c0_3] : memref<25x1xf32, #tpu.memory_space<vmem>>, vector<25x1xf32>
    tpu.vector_store %arg1[%c0_2, %c0_3], %30 {strides = array<i32>} : memref<25x1xf32, #tpu.memory_space<vmem>>, vector<25x1xf32>,
    return
  }
}

</mosaic_0001>

<llo_original>
// kernel: tpu_custom_call.1
$region0: #{tpu_custom_call.1}
  #allocation0 [shape = 'u32[]', space=smem, size = 0x4, offset = 0x4, fixed_abs, tag = 'smem constant byte address 0x4 - core index']
  #allocation1 [shape = 'u32[72,128]{1,0:T(1,128)}', space=vmem, size = 0x9000, scoped, tag = 'internal scratch']
  %s0 = inlined_call_operand.vmem [shape: s32[5,1], index: 0, kind: input, shape index: {}]
  %s1 = inlined_call_operand.vmem [shape: f32[25,1], index: 1, kind: output, shape index: {}]
  %s2 = sld [smem:[#allocation0]]
  $region14: #{tpu_custom_call.1} parent=0
    _
  %s4 = ssub.s32 1, %s2
  %s5 = scalar_select 0, %s4, %s2
  // Predicated region
  $region2: #{tpu_custom_call.1} parent=0 // pred_check
    _
  $region3: #{tpu_custom_call.1} parent=0 // pred_check_branch
    %7 = sbr.rel (0) target = $region5
  $region4: #{tpu_custom_call.1} parent=0 // pred_region
    _
  $region5: #{tpu_custom_call.1} parent=0 // pred_fallthru
    _
  %v8 = vld [vmem:[%s0] sm:$0x1f]
  %v9 = vlaneseq
  %v10 = vshrl.u32 %v9, 7
  %v11 = vmul.u32 %v10, 5
  %vm12 = vcmp.lt.s32.totalorder %v8, 5
  %v13 = vadd.s32 %v8, %v11
  %v14 = vsel %vm12, %v13, 4294967295
  %v15 = vadd.s32 %v10, 8
  %v16 = vadd.s32 %v10, 16
  %v17 = vadd.s32 %v10, 24
  %v18 = vperm.slane %v14, 0
  %vm19 = vcmp.eq.s32.totalorder %v10, %v18
  %vm20 = vcmp.eq.s32.totalorder %v15, %v18
  %vm21 = vcmp.eq.s32.totalorder %v16, %v18
  %vm22 = vcmp.eq.s32.totalorder %v17, %v18
  %v23 = vperm.slane %v14, 1
  %vm24 = vcmp.eq.s32.totalorder %v10, %v23
  %vm25 = vcmp.eq.s32.totalorder %v15, %v23
  %vm26 = vcmp.eq.s32.totalorder %v16, %v23
  %vm27 = vcmp.eq.s32.totalorder %v17, %v23
  %vm28 = vmor %vm19, %vm24
  %vm29 = vmor %vm20, %vm25
  %vm30 = vmor %vm21, %vm26
  %vm31 = vmor %vm22, %vm27
  %v32 = vperm.slane %v14, 2
  %vm33 = vcmp.eq.s32.totalorder %v10, %v32
  %vm34 = vcmp.eq.s32.totalorder %v15, %v32
  %vm35 = vcmp.eq.s32.totalorder %v16, %v32
  %vm36 = vcmp.eq.s32.totalorder %v17, %v32
  %vm37 = vmor %vm28, %vm33
  %vm38 = vmor %vm29, %vm34
  %vm39 = vmor %vm30, %vm35
  %vm40 = vmor %vm31, %vm36
  %v41 = vperm.slane %v14, 3
  %vm42 = vcmp.eq.s32.totalorder %v10, %v41
  %vm43 = vcmp.eq.s32.totalorder %v15, %v41
  %vm44 = vcmp.eq.s32.totalorder %v16, %v41
  %vm45 = vcmp.eq.s32.totalorder %v17, %v41
  %vm46 = vmor %vm37, %vm42
  %vm47 = vmor %vm38, %vm43
  %vm48 = vmor %vm39, %vm44
  %vm49 = vmor %vm40, %vm45
  %v50 = vperm.slane %v14, 4
  %vm51 = vcmp.eq.s32.totalorder %v10, %v50
  %vm52 = vcmp.eq.s32.totalorder %v15, %v50
  %vm53 = vcmp.eq.s32.totalorder %v16, %v50
  %vm54 = vcmp.eq.s32.totalorder %v17, %v50
  %vm55 = vmor %vm46, %vm51
  %vm56 = vmor %vm47, %vm52
  %vm57 = vmor %vm48, %vm53
  %vm58 = vmor %vm49, %vm54
  %v59 = vsel %vm55, 1, 0
  %v60 = vsel %vm56, 1, 0
  %v61 = vsel %vm57, 1, 0
  %v62 = vsel %vm58, 1, 0
  %v63 = vcvt.s32.f32 %v59
  %v64 = vcvt.s32.f32 %v60
  %v65 = vcvt.s32.f32 %v61
  %v66 = vcvt.s32.f32 %v62
  %vm67 = vcmask 7168
  %68 = vst.msk [vmem:[%s1] sm:$0xff] %vm67, %v63
  %69 = vst.msk [vmem:[%s1 + $0x8] sm:$0xff] %vm67, %v64
  %70 = vst.msk [vmem:[%s1 + $0x10] sm:$0xff] %vm67, %v65
  %vm71 = vcmask 0
  %72 = vst.msk [vmem:[%s1 + $0x18] sm:$0x1] %vm71, %v66
  // Predicated region
  $region6: #{tpu_custom_call.1} parent=0 // pred_check
    _
  $region7: #{tpu_custom_call.1} parent=0 // pred_check_branch
    %74 = sbr.rel (0) target = $region9
  $region8: #{tpu_custom_call.1} parent=0 // pred_region
    _
  $region9: #{tpu_custom_call.1} parent=0 // pred_fallthru
    _
  // Predicated region
  $region10: #{tpu_custom_call.1} parent=0 // pred_check
    _
  $region11: #{tpu_custom_call.1} parent=0 // pred_check_branch
    %76 = sbr.rel (0) target = $region13
  $region12: #{tpu_custom_call.1} parent=0 // pred_region
    _
  $region13: #{tpu_custom_call.1} parent=0 // pred_fallthru
    _

</llo_original>
